<compile_context>
chip_gen: v5e
topology: v5e:2x2
jax: 0.10.0
libtpu: 0.0.40
codegen_flags: <defaults>
</compile_context>

<pallas_src>
import functools
import math

import jax
import jax.numpy as jnp
from jax.experimental import pallas as pl
from jax.experimental.pallas import tpu as pltpu


def _round_up(x, m):
    return ((x + m - 1) // m) * m


# ---------------------------------------------------------------------------
# Fused single-pass kernel (used when the whole batch fits in one batch tile).
# grid = (N/tn, K/tk); weight tile is reparameterized in-register and consumed
# by the MXU directly.
# ---------------------------------------------------------------------------
def _fused_kernel(x_ref, mu_ref, ls_ref, eps_ref, b_ref, o_ref, acc_ref, *,
                  compute_dtype):
    k = pl.program_id(1)

    @pl.when(k == 0)
    def _():
        acc_ref[...] = jnp.zeros_like(acc_ref)

    # Reparameterize this (tk, tn) weight tile: EUP (exp) + VPU (mul/add) slots,
    # overlapped with the MXU work.
    wv = mu_ref[...] + jnp.exp(ls_ref[...]) * eps_ref[...]
    xv = x_ref[...]
    if compute_dtype is not None:
        xv = xv.astype(compute_dtype)
        wv = wv.astype(compute_dtype)
    acc_ref[...] += jnp.dot(xv, wv, preferred_element_type=jnp.float32)

    @pl.when(k == pl.num_programs(1) - 1)
    def _():
        o_ref[...] = (acc_ref[...] + b_ref[...]).astype(o_ref.dtype)


# ---------------------------------------------------------------------------
# Pass 1 (two-pass path): weight reparameterization, runs once per call.
#   w_t = mu_w^T + exp(log_sigma_w^T) * eps_w^T   -> (IN, OUT) "(K, N)" layout
# ---------------------------------------------------------------------------
def _reparam_kernel(mu_ref, ls_ref, eps_ref, w_ref):
    w_ref[...] = (mu_ref[...] + jnp.exp(ls_ref[...]) * eps_ref[...]).astype(
        w_ref.dtype)


def _reparam_weight(mu_wt, ls_wt, eps_wt, *, tk, tn, out_dtype):
    Kp, Np = mu_wt.shape
    spec = pl.BlockSpec((tk, tn), lambda i, j: (i, j))
    return pl.pallas_call(
        _reparam_kernel,
        out_shape=jax.ShapeDtypeStruct((Kp, Np), out_dtype),
        grid_spec=pltpu.PrefetchScalarGridSpec(
            num_scalar_prefetch=0,
            grid=(Kp // tk, Np // tn),
            in_specs=[spec, spec, spec],
            out_specs=spec,
        ),
        compiler_params=pltpu.CompilerParams(
            dimension_semantics=("parallel", "parallel")),
        cost_estimate=pl.CostEstimate(
            flops=2 * Kp * Np,
            transcendentals=Kp * Np,
            bytes_accessed=4 * 3 * Kp * Np + jnp.dtype(out_dtype).itemsize * Kp * Np),
    )(mu_wt, ls_wt, eps_wt)


# ---------------------------------------------------------------------------
# Pass 2 (two-pass path): tiled matmul + bias; weight consumed as (K, N).
# ---------------------------------------------------------------------------
def _matmul_bias_kernel(x_ref, w_ref, b_ref, o_ref, acc_ref, *, compute_dtype):
    k = pl.program_id(2)

    @pl.when(k == 0)
    def _():
        acc_ref[...] = jnp.zeros_like(acc_ref)

    xv = x_ref[...]
    wv = w_ref[...]
    if compute_dtype is not None:
        xv = xv.astype(compute_dtype)
        wv = wv.astype(compute_dtype)
    acc_ref[...] += jnp.dot(xv, wv, preferred_element_type=jnp.float32)

    @pl.when(k == pl.num_programs(2) - 1)
    def _():
        o_ref[...] = (acc_ref[...] + b_ref[...]).astype(o_ref.dtype)


def rand_linear_forward(x, mu_w, log_sigma_w, eps_w, mu_b, log_sigma_b, eps_b,
                        *, block_b=256, block_n=256, block_k=512,
                        compute_dtype=None):
    """x: (..., in). Returns (..., out). f32 path by default (exact parity);
    set compute_dtype=jnp.bfloat16 for full-rate MXU on v6e/v7x."""
    OUT, IN = mu_w.shape
    orig_shape = x.shape
    x2 = x.reshape(-1, IN)
    B = x2.shape[0]

    # Tile sizes: sublane-aligned batch tile; lane-dense (mult-of-128) N and K.
    tb = min(block_b, _round_up(B, 8))
    tn = min(block_n, _round_up(OUT, 128))
    tk = min(block_k, _round_up(IN, 128))
    Bp = _round_up(B, tb)
    Np = _round_up(OUT, tn)
    Kp = _round_up(IN, tk)

    f32 = jnp.float32
    w_dtype = compute_dtype if compute_dtype is not None else f32

    # Pre-transpose + zero-pad weight params to (Kp, Np) once (layout plumbing).
    # Padded region: mu = 0, eps = 0 -> w = 0 + exp(ls)*0 = 0, so it never
    # contributes to the contraction.
    def pad_t(p):
        return jnp.pad(p.astype(f32).T, ((0, Kp - IN), (0, Np - OUT)))

    # Bias reparameterization is tiny: hoisted out of the per-grid-step body.
    if mu_b is None:
        bias = jnp.zeros((OUT,), f32)
    elif log_sigma_b is None or eps_b is None:
        bias = mu_b.astype(f32)
    else:
        bias = (mu_b.astype(f32)
                + jnp.exp(log_sigma_b.astype(f32)) * eps_b.astype(f32))
    bias2 = jnp.pad(bias, (0, Np - OUT)).reshape(1, Np)

    xp = jnp.pad(x2, ((0, Bp - B), (0, Kp - IN)))

    mu_t = pad_t(mu_w)
    ls_t = pad_t(log_sigma_w)
    eps_t = pad_t(eps_w)

    if Bp // tb == 1:
        # ------------------ fused single-pass path (small batch) -------------
        kernel = functools.partial(_fused_kernel, compute_dtype=compute_dtype)
        vmem_bytes = 4 * (2 * tb * tk + 3 * 2 * tk * tn + 3 * tb * tn + 2 * tn)
        vmem_limit = int(min(max(2 * vmem_bytes, 16 * 1024 * 1024),
                             48 * 1024 * 1024))
        yp = pl.pallas_call(
            kernel,
            out_shape=jax.ShapeDtypeStruct((Bp, Np), x.dtype),
            grid_spec=pltpu.PrefetchScalarGridSpec(
                num_scalar_prefetch=0,
                grid=(Np // tn, Kp // tk),
                in_specs=[
                    pl.BlockSpec((tb, tk), lambda n, k: (0, k)),   # x tile
                    pl.BlockSpec((tk, tn), lambda n, k: (k, n)),   # mu_w^T
                    pl.BlockSpec((tk, tn), lambda n, k: (k, n)),   # log_sigma^T
                    pl.BlockSpec((tk, tn), lambda n, k: (k, n)),   # eps^T
                    pl.BlockSpec((1, tn), lambda n, k: (0, n)),    # bias row
                ],
                out_specs=pl.BlockSpec((tb, tn), lambda n, k: (0, n)),
                scratch_shapes=[pltpu.VMEM((tb, tn), jnp.float32)],
            ),
            compiler_params=pltpu.CompilerParams(
                dimension_semantics=("parallel", "arbitrary"),
                vmem_limit_bytes=vmem_limit),
            cost_estimate=pl.CostEstimate(
                flops=2 * Bp * Kp * Np + 2 * Kp * Np,
                transcendentals=Kp * Np,
                bytes_accessed=4 * ((Np // tn) * Bp * Kp + 3 * Kp * Np
                                    + Bp * Np + Np)),
        )(xp, mu_t, ls_t, eps_t, bias2)
    else:
        # ------------------ two-pass path (large batch) ----------------------
        w_t = _reparam_weight(mu_t, ls_t, eps_t, tk=tk, tn=tn, out_dtype=w_dtype)

        kernel = functools.partial(_matmul_bias_kernel,
                                   compute_dtype=compute_dtype)
        wb = jnp.dtype(w_dtype).itemsize
        vmem_bytes = (4 * (2 * tb * tk + 3 * tb * tn + 2 * tn)
                      + wb * 2 * tk * tn)
        vmem_limit = int(min(max(2 * vmem_bytes, 16 * 1024 * 1024),
                             48 * 1024 * 1024))
        yp = pl.pallas_call(
            kernel,
            out_shape=jax.ShapeDtypeStruct((Bp, Np), x.dtype),
            grid_spec=pltpu.PrefetchScalarGridSpec(
                num_scalar_prefetch=0,
                grid=(Bp // tb, Np // tn, Kp // tk),
                in_specs=[
                    pl.BlockSpec((tb, tk), lambda i, n, k: (i, k)),   # x tile
                    pl.BlockSpec((tk, tn), lambda i, n, k: (k, n)),   # w_t (K,N)
                    pl.BlockSpec((1, tn), lambda i, n, k: (0, n)),    # bias row
                ],
                out_specs=pl.BlockSpec((tb, tn), lambda i, n, k: (i, n)),
                scratch_shapes=[pltpu.VMEM((tb, tn), jnp.float32)],
            ),
            compiler_params=pltpu.CompilerParams(
                dimension_semantics=("parallel", "parallel", "arbitrary"),
                vmem_limit_bytes=vmem_limit),
            cost_estimate=pl.CostEstimate(
                flops=2 * Bp * Kp * Np,
                transcendentals=0,
                bytes_accessed=4 * (Bp * Kp + Bp * Np + Np) + wb * Kp * Np),
        )(xp, w_t, bias2)

    y = yp[:B, :OUT]
    return y.reshape(*orig_shape[:-1], OUT)


def init_rand_linear_params(key, in_features, out_features, sigma_start=1.0):
    """Deterministic parameter init mirroring RandLinear.__init__."""
    k_w, k_b = jax.random.split(key)
    bound_w = 1.0 / math.sqrt(in_features)   # kaiming_uniform_(a=sqrt(5)) bound
    mu_weight = jax.random.uniform(
        k_w, (out_features, in_features), jnp.float32, -bound_w, bound_w)
    log_sigma_weight = jnp.full((out_features, in_features),
                                math.log(sigma_start), jnp.float32)
    mu_bias = jax.random.uniform(
        k_b, (out_features,), jnp.float32, -bound_w, bound_w)
    log_sigma_bias = jnp.full((out_features,), math.log(sigma_start), jnp.float32)
    return mu_weight, log_sigma_weight, mu_bias, log_sigma_bias


if __name__ == "__main__":
    IN_FEATURES = 32
    OUT_FEATURES = 16
    BATCH = 8

    key = jax.random.PRNGKey(0)
    k_params, k_x, k_eps_w, k_eps_b = jax.random.split(key, 4)

    mu_w, log_s_w, mu_b, log_s_b = init_rand_linear_params(
        k_params, IN_FEATURES, OUT_FEATURES)

    x = jax.random.normal(k_x, (BATCH, IN_FEATURES), jnp.float32)
    # eps ~ N(0, 1), sampled deterministically (non-shared_eps path of forward).
    eps_w = jax.random.normal(k_eps_w, (OUT_FEATURES, IN_FEATURES), jnp.float32)
    eps_b = jax.random.normal(k_eps_b, (OUT_FEATURES,), jnp.float32)

    # Pure-JAX reference of the same forward.
    w_ref = mu_w + jnp.exp(log_s_w) * eps_w
    b_ref = mu_b + jnp.exp(log_s_b) * eps_b
    ref = x @ w_ref.T + b_ref

    # Small batch -> fused single-pass path.
    out = rand_linear_forward(x, mu_w, log_s_w, eps_w, mu_b, log_s_b, eps_b)
    out = jax.block_until_ready(out)
    assert out.shape == (BATCH, OUT_FEATURES)
    assert jnp.allclose(out, ref, atol=2e-5, rtol=2e-5)

    # Exercise the two-pass (large-batch) path too, with a tiny batch tile so
    # the batch grid has >1 step.
    out2 = rand_linear_forward(x, mu_w, log_s_w, eps_w, mu_b, log_s_b, eps_b,
                               block_b=8 if BATCH > 8 else 8)
    out2 = jax.block_until_ready(out2)
    big_x = jnp.tile(x, (64, 1))                      # batch 512 > block_b=256
    out3 = rand_linear_forward(big_x, mu_w, log_s_w, eps_w,
                               mu_b, log_s_b, eps_b)
    out3 = jax.block_until_ready(out3)
    ref3 = big_x @ w_ref.T + b_ref
    assert jnp.allclose(out3, ref3, atol=2e-5, rtol=2e-5)

    print("KERNEL_OK")
</pallas_src>

<mosaic_0001>
module attributes {stable_mosaic.version = 11 : i64} {
  func.func @_fused_kernel(%arg0: i32, %arg1: i32, %arg2: memref<8x128xf32, #tpu.memory_space<vmem>>, %arg3: memref<128x128xf32, #tpu.memory_space<vmem>>, %arg4: memref<128x128xf32, #tpu.memory_space<vmem>>, %arg5: memref<128x128xf32, #tpu.memory_space<vmem>>, %arg6: memref<1x128xf32, #tpu.memory_space<vmem>>, %arg7: memref<8x128xf32, #tpu.memory_space<vmem>>, %arg8: memref<8x128xf32, #tpu.memory_space<vmem>>) attributes {dimension_semantics = [#tpu.dimension_semantics<parallel>, #tpu.dimension_semantics<arbitrary>], iteration_bounds = array<i64: 1, 1>, scalar_prefetch = 0 : i64, scratch_operands = 1 : i64, tpu.core_type = #tpu.core_type<tc>, window_params = [{transform_indices = @transform_0, window_bounds = array<i64: 8, 128>}, {transform_indices = @transform_1, window_bounds = array<i64: 128, 128>}, {transform_indices = @transform_2, window_bounds = array<i64: 128, 128>}, {transform_indices = @transform_3, window_bounds = array<i64: 128, 128>}, {transform_indices = @transform_4, window_bounds = array<i64: 1, 128>}, {transform_indices = @transform_5, window_bounds = array<i64: 8, 128>}]} {
    %c0_i32 = arith.constant 0 : i32
    %0 = arith.cmpi eq, %arg1, %c0_i32 : i32
    %1 = arith.extui %0 : i1 to i32
    %c0_i32_0 = arith.constant 0 : i32
    %2 = arith.cmpi ne, %1, %c0_i32_0 : i32
    scf.if %2 {
      %cst_14 = arith.constant 0.000000e+00 : f32
      %17 = vector.broadcast %cst_14 : f32 to vector<8x128xf32>
      %c0_15 = arith.constant 0 : index
      %c0_16 = arith.constant 0 : index
      %18 = vector.load %arg8[%c0_15, %c0_16] : memref<8x128xf32, #tpu.memory_space<vmem>>, vector<8x128xf32>
      tpu.vector_store %arg8[%c0_15, %c0_16], %17 {strides = array<i32>} : memref<8x128xf32, #tpu.memory_space<vmem>>, vector<8x128xf32>,
    } else {
    }
    %c0 = arith.constant 0 : index
    %c0_1 = arith.constant 0 : index
    %3 = vector.load %arg3[%c0, %c0_1] : memref<128x128xf32, #tpu.memory_space<vmem>>, vector<128x128xf32>
    %c0_2 = arith.constant 0 : index
    %c0_3 = arith.constant 0 : index
    %4 = vector.load %arg4[%c0_2, %c0_3] : memref<128x128xf32, #tpu.memory_space<vmem>>, vector<128x128xf32>
    %5 = math.exp %4 : vector<128x128xf32>
    %c0_4 = arith.constant 0 : index
    %c0_5 = arith.constant 0 : index
    %6 = vector.load %arg5[%c0_4, %c0_5] : memref<128x128xf32, #tpu.memory_space<vmem>>, vector<128x128xf32>
    %7 = arith.mulf %5, %6 : vector<128x128xf32>
    %8 = arith.addf %3, %7 : vector<128x128xf32>
    %c0_6 = arith.constant 0 : index
    %c0_7 = arith.constant 0 : index
    %9 = vector.load %arg2[%c0_6, %c0_7] : memref<8x128xf32, #tpu.memory_space<vmem>>, vector<8x128xf32>
    %c0_8 = arith.constant 0 : index
    %c0_9 = arith.constant 0 : index
    %10 = vector.load %arg8[%c0_8, %c0_9] : memref<8x128xf32, #tpu.memory_space<vmem>>, vector<8x128xf32>
    %cst = arith.constant dense<0.000000e+00> : vector<8x128xf32>
    %11 = tpu.matmul %9, %8, %cst {dimension_numbers = #tpu.dot_dimension_numbers<[1], [0], [0], [1], [0, 0, 1, 1], [], []>} : vector<8x128xf32>, vector<128x128xf32>, vector<8x128xf32> -> vector<8x128xf32>
    %12 = arith.addf %10, %11 : vector<8x128xf32>
    %c0_10 = arith.constant 0 : index
    %c0_11 = arith.constant 0 : index
    %13 = vector.load %arg8[%c0_10, %c0_11] : memref<8x128xf32, #tpu.memory_space<vmem>>, vector<8x128xf32>
    tpu.vector_store %arg8[%c0_10, %c0_11], %12 {strides = array<i32>} : memref<8x128xf32, #tpu.memory_space<vmem>>, vector<8x128xf32>,
    %c0_i32_12 = arith.constant 0 : i32
    %14 = arith.cmpi eq, %arg1, %c0_i32_12 : i32
    %15 = arith.extui %14 : i1 to i32
    %c0_i32_13 = arith.constant 0 : i32
    %16 = arith.cmpi ne, %15, %c0_i32_13 : i32
    scf.if %16 {
      %c0_14 = arith.constant 0 : index
      %c0_15 = arith.constant 0 : index
      %17 = vector.load %arg8[%c0_14, %c0_15] : memref<8x128xf32, #tpu.memory_space<vmem>>, vector<8x128xf32>
      %c0_16 = arith.constant 0 : index
      %c0_17 = arith.constant 0 : index
      %18 = vector.load %arg6[%c0_16, %c0_17] : memref<1x128xf32, #tpu.memory_space<vmem>>, vector<1x128xf32>
      %19 = vector.broadcast %18 : vector<1x128xf32> to vector<8x128xf32>
      %20 = arith.addf %17, %19 : vector<8x128xf32>
      %c0_18 = arith.constant 0 : index
      %c0_19 = arith.constant 0 : index
      %21 = vector.load %arg7[%c0_18, %c0_19] : memref<8x128xf32, #tpu.memory_space<vmem>>, vector<8x128xf32>
      tpu.vector_store %arg7[%c0_18, %c0_19], %20 {strides = array<i32>} : memref<8x128xf32, #tpu.memory_space<vmem>>, vector<8x128xf32>,
    } else {
    }
    return
  }
  func.func @transform_0(%arg0: i32, %arg1: i32) -> (i32, i32) {
    %c0_i32 = arith.constant 0 : i32
    %c0_i32_0 = arith.constant 0 : i32
    return %c0_i32, %arg1 : i32, i32
  }
  func.func @transform_1(%arg0: i32, %arg1: i32) -> (i32, i32) {
    %c0_i32 = arith.constant 0 : i32
    return %arg1, %arg0 : i32, i32
  }
  func.func @transform_2(%arg0: i32, %arg1: i32) -> (i32, i32) {
    %c0_i32 = arith.constant 0 : i32
    return %arg1, %arg0 : i32, i32
  }
  func.func @transform_3(%arg0: i32, %arg1: i32) -> (i32, i32) {
    %c0_i32 = arith.constant 0 : i32
    return %arg1, %arg0 : i32, i32
  }
  func.func @transform_4(%arg0: i32, %arg1: i32) -> (i32, i32) {
    %c0_i32 = arith.constant 0 : i32
    %c0_i32_0 = arith.constant 0 : i32
    return %c0_i32, %arg0 : i32, i32
  }
  func.func @transform_5(%arg0: i32, %arg1: i32) -> (i32, i32) {
    %c0_i32 = arith.constant 0 : i32
    %c0_i32_0 = arith.constant 0 : i32
    return %c0_i32, %arg0 : i32, i32
  }
}

</mosaic_0001>

<llo_original>
// kernel: tpu_custom_call.1
$region0: #{tpu_custom_call.1}
  #allocation0 [shape = 'u32[]', space=smem, size = 0x4, offset = 0x4, fixed_abs, tag = 'smem constant byte address 0x4 - core index']
  #allocation1 [shape = 'u32[72,128]{1,0:T(1,128)}', space=vmem, size = 0x9000, scoped, tag = 'internal scratch']
  #allocation2 [shape = 'f32[8,128]{1,0:T(8,128)}', space=vmem, size = 0x1000, scoped, tag = 'scratch operand']
  %s0 = inlined_call_operand.hbm [shape: f32[8,128], index: 0, kind: input, shape index: {}]
  %s1 = inlined_call_operand.hbm [shape: f32[128,128], index: 1, kind: input, shape index: {}]
  %s2 = inlined_call_operand.hbm [shape: f32[128,128], index: 2, kind: input, shape index: {}]
  %s3 = inlined_call_operand.hbm [shape: f32[128,128], index: 3, kind: input, shape index: {}]
  %s4 = inlined_call_operand.vmem [shape: f32[1,128], index: 4, kind: input, shape index: {}]
  %s5 = inlined_call_operand.hbm [shape: f32[8,128], index: 5, kind: output, shape index: {}]
  %s6 = sld [smem:[#allocation0]]
  $region54: #{tpu_custom_call.1} parent=0
    _
  %s8 = ssub.s32 1, %s6
  %s9 = scalar_select 0, %s8, %s6
  $region1: #{tpu_custom_call.1} parent=0
    #allocation3 [shape = 'u8[4096]{0}', space=vmem, size = 0x1000, scoped, tag = 'input window, operand 0, single buffered']
    #allocation4 [shape = 's32[1]{0}', space=sflag, size = 0x4, scoped, tag = 'scoped memory for tpu_custom_call.1']
    #allocation5 [shape = 's32[1]{0}', space=sflag, size = 0x4, scoped, tag = 'scoped memory for tpu_custom_call.1']
    #allocation6 [shape = 'u8[65536]{0}', space=vmem, size = 0x10000, scoped, tag = 'input window, operand 1, single buffered']
    #allocation7 [shape = 's32[1]{0}', space=sflag, size = 0x4, scoped, tag = 'scoped memory for tpu_custom_call.1']
    #allocation8 [shape = 'u8[65536]{0}', space=vmem, size = 0x10000, scoped, tag = 'input window, operand 2, single buffered']
    #allocation9 [shape = 'u8[65536]{0}', space=vmem, size = 0x10000, scoped, tag = 'input window, operand 3, single buffered']
    #allocation10 [shape = 's32[1]{0}', space=sflag, size = 0x4, scoped, tag = 'scoped memory for tpu_custom_call.1']
    #allocation11 [shape = 'u8[4096]{0}', space=vmem, size = 0x1000, scoped, tag = 'output window, operand 0, single buffered']
    %10 = vsyncpa [#allocation4], 0
    %11 = vsyncpa [#allocation7], 0
    %12 = vsyncpa [#allocation10], 0
    %13 = vsyncpa [#allocation5], 0
    // Predicated region
    $region2: #{tpu_custom_call.1} parent=1 // pred_check
      _
    $region3: #{tpu_custom_call.1} parent=1 // pred_check_branch
      %15 = sbr.rel (0) target = $region5
    $region4: #{tpu_custom_call.1} parent=1 // pred_region
      %17 = vsyncadd [#allocation4], 0
      %s19 = sshll.u32 %s0, 4
      %s20 = int_to_ptr.hbm [resolvable:$true] %s19
      %s21 = sshll.u32 [#allocation3], 4
      %s22 = int_to_ptr.vmem [resolvable:$true] %s21
      %24 = dma.hbm_to_vmem [thread:$0]  %s20, 128, %s22, [#allocation4]
    $region5: #{tpu_custom_call.1} parent=1 // pred_fallthru
      _
    // Predicated region
    $region6: #{tpu_custom_call.1} parent=1 // pred_check
      _
    $region7: #{tpu_custom_call.1} parent=1 // pred_check_branch
      %26 = sbr.rel (0) target = $region9
    $region8: #{tpu_custom_call.1} parent=1 // pred_region
      %28 = vsyncadd [#allocation7], 0
      %s29 = sshll.u32 %s1, 4
      %s30 = int_to_ptr.hbm [resolvable:$true] %s29
      %s31 = sshll.u32 [#allocation6], 4
      %s32 = int_to_ptr.vmem [resolvable:$true] %s31
      %37 = dma.hbm_to_vmem [thread:$0]  %s30, 2048, %s32, [#allocation7], 128, 128, 8
    $region9: #{tpu_custom_call.1} parent=1 // pred_fallthru
      _
    // Predicated region
    $region10: #{tpu_custom_call.1} parent=1 // pred_check
      _
    $region11: #{tpu_custom_call.1} parent=1 // pred_check_branch
      %39 = sbr.rel (0) target = $region13
    $region12: #{tpu_custom_call.1} parent=1 // pred_region
      %41 = vsyncadd [#allocation7], 0
      %s42 = sshll.u32 %s2, 4
      %s43 = int_to_ptr.hbm [resolvable:$true] %s42
      %s44 = sshll.u32 [#allocation8], 4
      %s45 = int_to_ptr.vmem [resolvable:$true] %s44
      %50 = dma.hbm_to_vmem [thread:$0]  %s43, 2048, %s45, [#allocation7], 128, 128, 8
    $region13: #{tpu_custom_call.1} parent=1 // pred_fallthru
      _
    // Predicated region
    $region14: #{tpu_custom_call.1} parent=1 // pred_check
      _
    $region15: #{tpu_custom_call.1} parent=1 // pred_check_branch
      %52 = sbr.rel (0) target = $region17
    $region16: #{tpu_custom_call.1} parent=1 // pred_region
      %54 = vsyncadd [#allocation10], 0
      %s55 = sshll.u32 %s3, 4
      %s56 = int_to_ptr.hbm [resolvable:$true] %s55
      %s57 = sshll.u32 [#allocation9], 4
      %s58 = int_to_ptr.vmem [resolvable:$true] %s57
      %63 = dma.hbm_to_vmem [thread:$0]  %s56, 2048, %s58, [#allocation10], 128, 128, 8
    $region17: #{tpu_custom_call.1} parent=1 // pred_fallthru
      _
    // Predicated region
    $region18: #{tpu_custom_call.1} parent=1 // pred_check
      _
    $region19: #{tpu_custom_call.1} parent=1 // pred_check_branch
      %65 = sbr.rel (0) target = $region21
    $region20: #{tpu_custom_call.1} parent=1 // pred_region
      _
    $region21: #{tpu_custom_call.1} parent=1 // pred_fallthru
      _
    // Predicated region
    $region22: #{tpu_custom_call.1} parent=1 // pred_check
      _
    $region23: #{tpu_custom_call.1} parent=1 // pred_check_branch
      %67 = sbr.rel (0) target = $region25
    $region24: #{tpu_custom_call.1} parent=1 // pred_region
      %69 = dma.done [#allocation4], 128
    $region25: #{tpu_custom_call.1} parent=1 // pred_fallthru
      _
    // Predicated region
    $region26: #{tpu_custom_call.1} parent=1 // pred_check
      _
    $region27: #{tpu_custom_call.1} parent=1 // pred_check_branch
      %71 = sbr.rel (0) target = $region29
    $region28: #{tpu_custom_call.1} parent=1 // pred_region
      %73 = dma.done [#allocation7], 2048
    $region29: #{tpu_custom_call.1} parent=1 // pred_fallthru
      _
    // Predicated region
    $region30: #{tpu_custom_call.1} parent=1 // pred_check
      _
    $region31: #{tpu_custom_call.1} parent=1 // pred_check_branch
      %75 = sbr.rel (0) target = $region33
    $region32: #{tpu_custom_call.1} parent=1 // pred_region
      %77 = dma.done [#allocation7], 2048
    $region33: #{tpu_custom_call.1} parent=1 // pred_fallthru
      _
    // Predicated region
    $region34: #{tpu_custom_call.1} parent=1 // pred_check
      _
    $region35: #{tpu_custom_call.1} parent=1 // pred_check_branch
      %79 = sbr.rel (0) target = $region37
    $region36: #{tpu_custom_call.1} parent=1 // pred_region
      %81 = dma.done [#allocation10], 2048
    $region37: #{tpu_custom_call.1} parent=1 // pred_fallthru
      _
    %p82 = scmp.eq.s32.totalorder 0, 0
    // Predicated region
    $region38: #{tpu_custom_call.1} parent=1 // pred_check
      %p83 = pneg %p82
    $region39: #{tpu_custom_call.1} parent=1 // pred_check_branch
      %85 = sbr.rel (%p83) target = $region41
    $region40: #{tpu_custom_call.1} parent=1 // pred_region
      %86 = vst [vmem:[#allocation2] sm:$0xff] 0.0
    $region41: #{tpu_custom_call.1} parent=1 // pred_fallthru
      _
    %v87 = vld [vmem:[#allocation6] sm:$0xff]
    %v88 = vld [vmem:[#allocation6 + $0x8] sm:$0xff]
    %v89 = vld [vmem:[#allocation6 + $0x10] sm:$0xff]
    %v90 = vld [vmem:[#allocation6 + $0x18] sm:$0xff]
    %v91 = vld [vmem:[#allocation6 + $0x20] sm:$0xff]
    %v92 = vld [vmem:[#allocation6 + $0x28] sm:$0xff]
    %v93 = vld [vmem:[#allocation6 + $0x30] sm:$0xff]
    %v94 = vld [vmem:[#allocation6 + $0x38] sm:$0xff]
    %v95 = vld [vmem:[#allocation6 + $0x40] sm:$0xff]
    %v96 = vld [vmem:[#allocation6 + $0x48] sm:$0xff]
    %v97 = vld [vmem:[#allocation6 + $0x50] sm:$0xff]
    %v98 = vld [vmem:[#allocation6 + $0x58] sm:$0xff]
    %v99 = vld [vmem:[#allocation6 + $0x60] sm:$0xff]
    %v100 = vld [vmem:[#allocation6 + $0x68] sm:$0xff]
    %v101 = vld [vmem:[#allocation6 + $0x70] sm:$0xff]
    %v102 = vld [vmem:[#allocation6 + $0x78] sm:$0xff]
    %v103 = vld [vmem:[#allocation8] sm:$0xff]
    %v104 = vld [vmem:[#allocation8 + $0x8] sm:$0xff]
    %v105 = vld [vmem:[#allocation8 + $0x10] sm:$0xff]
    %v106 = vld [vmem:[#allocation8 + $0x18] sm:$0xff]
    %v107 = vld [vmem:[#allocation8 + $0x20] sm:$0xff]
    %v108 = vld [vmem:[#allocation8 + $0x28] sm:$0xff]
    %v109 = vld [vmem:[#allocation8 + $0x30] sm:$0xff]
    %v110 = vld [vmem:[#allocation8 + $0x38] sm:$0xff]
    %v111 = vld [vmem:[#allocation8 + $0x40] sm:$0xff]
    %v112 = vld [vmem:[#allocation8 + $0x48] sm:$0xff]
    %v113 = vld [vmem:[#allocation8 + $0x50] sm:$0xff]
    %v114 = vld [vmem:[#allocation8 + $0x58] sm:$0xff]
    %v115 = vld [vmem:[#allocation8 + $0x60] sm:$0xff]
    %v116 = vld [vmem:[#allocation8 + $0x68] sm:$0xff]
    %v117 = vld [vmem:[#allocation8 + $0x70] sm:$0xff]
    %v118 = vld [vmem:[#allocation8 + $0x78] sm:$0xff]
    %v119 = vmul.f32 %v103, 1.442695
    %v120 = vpow.pop %v119
    %v121 = vmul.f32 %v104, 1.442695
    %v122 = vpow.pop %v121
    %v123 = vmul.f32 %v105, 1.442695
    %v124 = vpow.pop %v123
    %v125 = vmul.f32 %v106, 1.442695
    %v126 = vpow.pop %v125
    %v127 = vmul.f32 %v107, 1.442695
    %v128 = vpow.pop %v127
    %v129 = vmul.f32 %v108, 1.442695
    %v130 = vpow.pop %v129
    %v131 = vmul.f32 %v109, 1.442695
    %v132 = vpow.pop %v131
    %v133 = vmul.f32 %v110, 1.442695
    %v134 = vpow.pop %v133
    %v135 = vmul.f32 %v111, 1.442695
    %v136 = vpow.pop %v135
    %v137 = vmul.f32 %v112, 1.442695
    %v138 = vpow.pop %v137
    %v139 = vmul.f32 %v113, 1.442695
    %v140 = vpow.pop %v139
    %v141 = vmul.f32 %v114, 1.442695
    %v142 = vpow.pop %v141
    %v143 = vmul.f32 %v115, 1.442695
    %v144 = vpow.pop %v143
    %v145 = vmul.f32 %v116, 1.442695
    %v146 = vpow.pop %v145
    %v147 = vmul.f32 %v117, 1.442695
    %v148 = vpow.pop %v147
    %v149 = vmul.f32 %v118, 1.442695
    %v150 = vpow.pop %v149
    %v151 = vld [vmem:[#allocation9] sm:$0xff]
    %v152 = vld [vmem:[#allocation9 + $0x8] sm:$0xff]
    %v153 = vld [vmem:[#allocation9 + $0x10] sm:$0xff]
    %v154 = vld [vmem:[#allocation9 + $0x18] sm:$0xff]
    %v155 = vld [vmem:[#allocation9 + $0x20] sm:$0xff]
    %v156 = vld [vmem:[#allocation9 + $0x28] sm:$0xff]
    %v157 = vld [vmem:[#allocation9 + $0x30] sm:$0xff]
    %v158 = vld [vmem:[#allocation9 + $0x38] sm:$0xff]
    %v159 = vld [vmem:[#allocation9 + $0x40] sm:$0xff]
    %v160 = vld [vmem:[#allocation9 + $0x48] sm:$0xff]
    %v161 = vld [vmem:[#allocation9 + $0x50] sm:$0xff]
    %v162 = vld [vmem:[#allocation9 + $0x58] sm:$0xff]
    %v163 = vld [vmem:[#allocation9 + $0x60] sm:$0xff]
    %v164 = vld [vmem:[#allocation9 + $0x68] sm:$0xff]
    %v165 = vld [vmem:[#allocation9 + $0x70] sm:$0xff]
    %v166 = vld [vmem:[#allocation9 + $0x78] sm:$0xff]
    %v167 = vmul.f32 %v120, %v151
    %v168 = vmul.f32 %v122, %v152
    %v169 = vmul.f32 %v124, %v153
    %v170 = vmul.f32 %v126, %v154
    %v171 = vmul.f32 %v128, %v155
    %v172 = vmul.f32 %v130, %v156
    %v173 = vmul.f32 %v132, %v157
    %v174 = vmul.f32 %v134, %v158
    %v175 = vmul.f32 %v136, %v159
    %v176 = vmul.f32 %v138, %v160
    %v177 = vmul.f32 %v140, %v161
    %v178 = vmul.f32 %v142, %v162
    %v179 = vmul.f32 %v144, %v163
    %v180 = vmul.f32 %v146, %v164
    %v181 = vmul.f32 %v148, %v165
    %v182 = vmul.f32 %v150, %v166
    %v183 = vadd.f32 %v87, %v167
    %v184 = vadd.f32 %v88, %v168
    %v185 = vadd.f32 %v89, %v169
    %v186 = vadd.f32 %v90, %v170
    %v187 = vadd.f32 %v91, %v171
    %v188 = vadd.f32 %v92, %v172
    %v189 = vadd.f32 %v93, %v173
    %v190 = vadd.f32 %v94, %v174
    %v191 = vadd.f32 %v95, %v175
    %v192 = vadd.f32 %v96, %v176
    %v193 = vadd.f32 %v97, %v177
    %v194 = vadd.f32 %v98, %v178
    %v195 = vadd.f32 %v99, %v179
    %v196 = vadd.f32 %v100, %v180
    %v197 = vadd.f32 %v101, %v181
    %v198 = vadd.f32 %v102, %v182
    %v199 = vld [vmem:[#allocation3] sm:$0xff]
    %v200 = vld [vmem:[#allocation2] sm:$0xff]
    %201 = vmatpush.msra.mxu0 %v198
    %202 = vmatpush.msra.mxu0 %v197
    %203 = vmatpush.msra.mxu0 %v196
    %204 = vmatpush.msra.mxu0 %v195
    %205 = vmatpush.msra.mxu0 %v194
    %206 = vmatpush.msra.mxu0 %v193
    %207 = vmatpush.msra.mxu0 %v192
    %208 = vmatpush.msra.mxu0 %v191
    %209 = vmatpush.msra.mxu0 %v190
    %210 = vmatpush.msra.mxu0 %v189
    %211 = vmatpush.msra.mxu0 %v188
    %212 = vmatpush.msra.mxu0 %v187
    %213 = vmatpush.msra.mxu0 %v186
    %214 = vmatpush.msra.mxu0 %v185
    %215 = vmatpush.msra.mxu0 %v184
    %216 = vmatpush.msra.mxu0 %v183
    %217 = vmatmul.f32.gmra.mxu0 %v199
    %v218 = vpop.f32.mrf.mxu0
    %v219 = vadd.f32 0.0, %v218
    %220 = vdwg.mxu0
    %v221 = vadd.f32 %v200, %v219
    %222 = vst [vmem:[#allocation2] sm:$0xff] %v221
    // Predicated region
    $region42: #{tpu_custom_call.1} parent=1 // pred_check
      %p223 = pneg %p82
    $region43: #{tpu_custom_call.1} parent=1 // pred_check_branch
      %225 = sbr.rel (%p223) target = $region45
    $region44: #{tpu_custom_call.1} parent=1 // pred_region
      %v226 = vld [vmem:[#allocation2] sm:$0xff]
      %v227 = vld [vmem:[%s4] sm:$0x1]
      %v229 = vperm.slane %v227, 0
      %v231 = vadd.f32 %v226, %v229
      %232 = vst [vmem:[#allocation11] sm:$0xff] %v231
    $region45: #{tpu_custom_call.1} parent=1 // pred_fallthru
      _
    // Predicated region
    $region46: #{tpu_custom_call.1} parent=1 // pred_check
      _
    $region47: #{tpu_custom_call.1} parent=1 // pred_check_branch
      %234 = sbr.rel (0) target = $region49
    $region48: #{tpu_custom_call.1} parent=1 // pred_region
      %236 = vsyncadd [#allocation5], 0
      %s238 = sshll.u32 [#allocation11], 4
      %s239 = int_to_ptr.vmem [resolvable:$true] %s238
      %s240 = sshll.u32 %s5, 4
      %s241 = int_to_ptr.hbm [resolvable:$true] %s240
      %243 = dma.vmem_to_hbm [thread:$0]  %s239, 128, %s241, [#allocation5]
    $region49: #{tpu_custom_call.1} parent=1 // pred_fallthru
      _
    // Predicated region
    $region50: #{tpu_custom_call.1} parent=1 // pred_check
      _
    $region51: #{tpu_custom_call.1} parent=1 // pred_check_branch
      %245 = sbr.rel (0) target = $region53
    $region52: #{tpu_custom_call.1} parent=1 // pred_region
      %247 = dma.done [#allocation5], 128
    $region53: #{tpu_custom_call.1} parent=1 // pred_fallthru
      _
    %248 = vsyncpa [#allocation4], 1
    %249 = vsyncpa [#allocation7], 1
    %250 = vsyncpa [#allocation10], 1
    %251 = vsyncpa [#allocation5], 1

</llo_original>
